<compile_context>
chip_gen: v5e
topology: v5e:2x2
jax: 0.10.0
libtpu: 0.0.40
codegen_flags: <defaults>
</compile_context>

<pallas_src>
import functools

import jax
import jax.numpy as jnp
from jax import lax
from jax.experimental import pallas as pl
from jax.experimental.pallas import tpu as pltpu


def _round_up(a: int, b: int) -> int:
    return (a + b - 1) // b * b


def sublayer_forward(x, w, wb, gain, bias, *, tile_m=256, max_resident_k=1024):
    """Sublayer forward: LayerNorm(x @ w + wb + x).

    x: (B, S, D);  w: (D, D) with y = x @ w;  wb, gain, bias: (D,).
    """
    B, S, D = x.shape
    N = B * S
    out_dtype = x.dtype
    f32 = jnp.float32

    # ---- tiling choices -----------------------------------------------------
    # Lane-dense d_model (multiple of 128).
    D_pad = _round_up(D, 128)
    # Contraction (K) tiling: keep the whole (padded) weight resident while it
    # is small; otherwise tile K so the weight block stays bounded (v7x VMEM).
    if D_pad <= max_resident_k:
        tk = D_pad
    else:
        tk = 512
        D_pad = _round_up(D_pad, tk)
    nk = D_pad // tk

    # Large row tiles amortize the ~0.35us/step overhead; clamp for tiny N.
    tm = min(tile_m, _round_up(N, 8))
    N_pad = _round_up(N, tm)
    n_rows = N_pad // tm

    # ---- host-side padding / casting ---------------------------------------
    x_rows = jnp.zeros((N_pad, D_pad), f32).at[:N, :D].set(
        x.reshape(N, D).astype(f32))                       # f32 rows (residual)
    x_mm = x_rows.astype(jnp.bfloat16)                      # bf16 rows (MXU)
    w_p = jnp.zeros((D_pad, D_pad), jnp.bfloat16).at[:D, :D].set(
        w.astype(jnp.bfloat16))                             # bf16 weight (MXU)
    wb_p = jnp.zeros((1, D_pad), f32).at[0, :D].set(wb.astype(f32))
    g_p = jnp.zeros((1, D_pad), f32).at[0, :D].set(gain.astype(f32))
    b_p = jnp.zeros((1, D_pad), f32).at[0, :D].set(bias.astype(f32))

    need_mask = D != D_pad

    # ---- kernel --------------------------------------------------------------
    def kernel(x_mm_ref, x_res_ref, w_ref, wb_ref, g_ref, b_ref, o_ref, acc_ref):
        k = pl.program_id(1)

        @pl.when(k == 0)
        def _init():
            acc_ref[...] = jnp.zeros_like(acc_ref)

        # bf16 x bf16 -> f32 accumulate on the MXU.
        acc_ref[...] += jnp.dot(x_mm_ref[...], w_ref[...],
                                preferred_element_type=jnp.float32)

        @pl.when(k == nk - 1)
        def _finalize():
            # residual add (f32) + linear bias
            z = acc_ref[...] + wb_ref[...] + x_res_ref[...]

            # LayerNorm over the true d_model (padded lanes of z are exactly 0)
            if need_mask:
                lane = lax.broadcasted_iota(jnp.int32, z.shape, 1)
                valid = lane < D
                mean = jnp.sum(jnp.where(valid, z, 0.0), axis=-1,
                               keepdims=True) * (1.0 / D)
                centered = jnp.where(valid, z - mean, 0.0)
            else:
                mean = jnp.mean(z, axis=-1, keepdims=True)
                centered = z - mean

            # torch.std: Bessel-corrected (D-1); eps added to std, not var.
            var_unbiased = jnp.sum(centered * centered, axis=-1,
                                   keepdims=True) * (1.0 / (D - 1))
            std = jnp.sqrt(var_unbiased)
            inv = pl.reciprocal(std + 1e-6, approx=False)   # (tm, 1), exact

            out = centered * (g_ref[...] * inv) + b_ref[...]
            o_ref[...] = out.astype(o_ref.dtype)

    out_padded = pl.pallas_call(
        kernel,
        out_shape=jax.ShapeDtypeStruct((N_pad, D_pad), out_dtype),
        grid_spec=pltpu.PrefetchScalarGridSpec(
            num_scalar_prefetch=0,
            grid=(n_rows, nk),
            in_specs=[
                pl.BlockSpec((tm, tk), lambda i, k: (i, k)),     # x bf16 (matmul)
                pl.BlockSpec((tm, D_pad), lambda i, k: (i, 0)),  # x f32 (residual)
                pl.BlockSpec((tk, D_pad), lambda i, k: (k, 0)),  # weight bf16
                pl.BlockSpec((1, D_pad), lambda i, k: (0, 0)),   # linear bias
                pl.BlockSpec((1, D_pad), lambda i, k: (0, 0)),   # LN gain
                pl.BlockSpec((1, D_pad), lambda i, k: (0, 0)),   # LN bias
            ],
            out_specs=pl.BlockSpec((tm, D_pad), lambda i, k: (i, 0)),
            scratch_shapes=[pltpu.VMEM((tm, D_pad), jnp.float32)],  # f32 acc
        ),
        compiler_params=pltpu.CompilerParams(
            dimension_semantics=("parallel", "arbitrary"),
            vmem_limit_bytes=64 * 1024 * 1024,
        ),
    )(x_mm, x_rows, w_p, wb_p, g_p, b_p)

    return out_padded[:N, :D].reshape(B, S, D)


if __name__ == "__main__":
    # small shapes: batch=2, seq=8, d_model=32
    B, S, D = 2, 8, 32
    key = jax.random.PRNGKey(0)
    kx, kw, kb = jax.random.split(key, 3)

    x = jax.random.normal(kx, (B, S, D), dtype=jnp.float32)

    # deterministic synthetic parameters (not a checkpoint load)
    w = jax.random.normal(kw, (D, D), dtype=jnp.float32) * (1.0 / jnp.sqrt(D))
    wb = jax.random.normal(kb, (D,), dtype=jnp.float32) * 0.02
    gain = jnp.ones((D,), dtype=jnp.float32)   # LayerNormalization gain init
    bias = jnp.zeros((D,), dtype=jnp.float32)  # LayerNormalization bias init

    fwd = jax.jit(functools.partial(sublayer_forward))
    out = fwd(x, w, wb, gain, bias)
    jax.block_until_ready(out)

    # Reference matching the kernel's precision (bf16 operands, f32 accumulate)
    x2 = x.reshape(-1, D)
    y_ref = jnp.dot(x2.astype(jnp.bfloat16), w.astype(jnp.bfloat16),
                    preferred_element_type=jnp.float32) + wb
    z_ref = y_ref + x2
    mean = jnp.mean(z_ref, axis=-1, keepdims=True)
    std = jnp.sqrt(jnp.sum((z_ref - mean) ** 2, axis=-1, keepdims=True) / (D - 1))
    ref = (gain * (z_ref - mean) / (std + 1e-6) + bias).reshape(B, S, D)
    assert jnp.allclose(out, ref, atol=2e-3, rtol=2e-3), "mismatch vs bf16 reference"

    # Looser sanity check against the pure-f32 (exact torch-semantics) reference
    y32 = x2 @ w + wb
    z32 = y32 + x2
    m32 = jnp.mean(z32, axis=-1, keepdims=True)
    s32 = jnp.sqrt(jnp.sum((z32 - m32) ** 2, axis=-1, keepdims=True) / (D - 1))
    ref32 = (gain * (z32 - m32) / (s32 + 1e-6) + bias).reshape(B, S, D)
    assert jnp.allclose(out, ref32, atol=1e-1, rtol=1e-1), "mismatch vs f32 reference"

    print("KERNEL_OK")
</pallas_src>

<mosaic_0001>
module attributes {stable_mosaic.version = 11 : i64} {
  func.func @kernel(%arg0: i32, %arg1: i32, %arg2: memref<16x128xbf16, #tpu.memory_space<vmem>>, %arg3: memref<16x128xf32, #tpu.memory_space<vmem>>, %arg4: memref<128x128xbf16, #tpu.memory_space<vmem>>, %arg5: memref<1x128xf32, #tpu.memory_space<vmem>>, %arg6: memref<1x128xf32, #tpu.memory_space<vmem>>, %arg7: memref<1x128xf32, #tpu.memory_space<vmem>>, %arg8: memref<16x128xf32, #tpu.memory_space<vmem>>, %arg9: memref<16x128xf32, #tpu.memory_space<vmem>>) attributes {dimension_semantics = [#tpu.dimension_semantics<parallel>, #tpu.dimension_semantics<arbitrary>], iteration_bounds = array<i64: 1, 1>, scalar_prefetch = 0 : i64, scratch_operands = 1 : i64, tpu.core_type = #tpu.core_type<tc>, window_params = [{transform_indices = @transform_0, window_bounds = array<i64: 16, 128>}, {transform_indices = @transform_1, window_bounds = array<i64: 16, 128>}, {transform_indices = @transform_2, window_bounds = array<i64: 128, 128>}, {pipeline_mode = #tpu.pipeline_mode<synchronous>, transform_indices = @transform_3, window_bounds = array<i64: 1, 128>}, {pipeline_mode = #tpu.pipeline_mode<synchronous>, transform_indices = @transform_4, window_bounds = array<i64: 1, 128>}, {pipeline_mode = #tpu.pipeline_mode<synchronous>, transform_indices = @transform_5, window_bounds = array<i64: 1, 128>}, {transform_indices = @transform_6, window_bounds = array<i64: 16, 128>}]} {
    %c0_i32 = arith.constant 0 : i32
    %0 = arith.cmpi eq, %arg1, %c0_i32 : i32
    %1 = arith.extui %0 : i1 to i32
    %c0_i32_0 = arith.constant 0 : i32
    %2 = arith.cmpi ne, %1, %c0_i32_0 : i32
    scf.if %2 {
      %cst_10 = arith.constant 0.000000e+00 : f32
      %12 = vector.broadcast %cst_10 : f32 to vector<16x128xf32>
      %c0_11 = arith.constant 0 : index
      %c0_12 = arith.constant 0 : index
      %13 = vector.load %arg9[%c0_11, %c0_12] : memref<16x128xf32, #tpu.memory_space<vmem>>, vector<16x128xf32>
      tpu.vector_store %arg9[%c0_11, %c0_12], %12 {strides = array<i32>} : memref<16x128xf32, #tpu.memory_space<vmem>>, vector<16x128xf32>,
    } else {
    }
    %c0 = arith.constant 0 : index
    %c0_1 = arith.constant 0 : index
    %3 = vector.load %arg9[%c0, %c0_1] : memref<16x128xf32, #tpu.memory_space<vmem>>, vector<16x128xf32>
    %c0_2 = arith.constant 0 : index
    %c0_3 = arith.constant 0 : index
    %4 = vector.load %arg2[%c0_2, %c0_3] : memref<16x128xbf16, #tpu.memory_space<vmem>>, vector<16x128xbf16>
    %c0_4 = arith.constant 0 : index
    %c0_5 = arith.constant 0 : index
    %5 = vector.load %arg4[%c0_4, %c0_5] : memref<128x128xbf16, #tpu.memory_space<vmem>>, vector<128x128xbf16>
    %cst = arith.constant dense<0.000000e+00> : vector<16x128xf32>
    %6 = tpu.matmul %4, %5, %cst {dimension_numbers = #tpu.dot_dimension_numbers<[1], [0], [0], [1], [0, 0, 1, 1], [], []>} : vector<16x128xbf16>, vector<128x128xbf16>, vector<16x128xf32> -> vector<16x128xf32>
    %7 = arith.addf %3, %6 : vector<16x128xf32>
    %c0_6 = arith.constant 0 : index
    %c0_7 = arith.constant 0 : index
    %8 = vector.load %arg9[%c0_6, %c0_7] : memref<16x128xf32, #tpu.memory_space<vmem>>, vector<16x128xf32>
    tpu.vector_store %arg9[%c0_6, %c0_7], %7 {strides = array<i32>} : memref<16x128xf32, #tpu.memory_space<vmem>>, vector<16x128xf32>,
    %c0_i32_8 = arith.constant 0 : i32
    %9 = arith.cmpi eq, %arg1, %c0_i32_8 : i32
    %10 = arith.extui %9 : i1 to i32
    %c0_i32_9 = arith.constant 0 : i32
    %11 = arith.cmpi ne, %10, %c0_i32_9 : i32
    scf.if %11 {
      %c0_10 = arith.constant 0 : index
      %c0_11 = arith.constant 0 : index
      %12 = vector.load %arg9[%c0_10, %c0_11] : memref<16x128xf32, #tpu.memory_space<vmem>>, vector<16x128xf32>
      %c0_12 = arith.constant 0 : index
      %c0_13 = arith.constant 0 : index
      %13 = vector.load %arg5[%c0_12, %c0_13] : memref<1x128xf32, #tpu.memory_space<vmem>>, vector<1x128xf32>
      %14 = vector.broadcast %13 : vector<1x128xf32> to vector<16x128xf32>
      %15 = arith.addf %12, %14 : vector<16x128xf32>
      %c0_14 = arith.constant 0 : index
      %c0_15 = arith.constant 0 : index
      %16 = vector.load %arg3[%c0_14, %c0_15] : memref<16x128xf32, #tpu.memory_space<vmem>>, vector<16x128xf32>
      %17 = arith.addf %15, %16 : vector<16x128xf32>
      %18 = tpu.iota {dimensions = array<i32: 1>} : vector<16x128xi32>
      %c32_i32 = arith.constant 32 : i32
      %19 = vector.broadcast %c32_i32 : i32 to vector<16x128xi32>
      %20 = arith.cmpi slt, %18, %19 : vector<16x128xi32>
      %cst_16 = arith.constant 0.000000e+00 : f32
      %21 = vector.broadcast %cst_16 : f32 to vector<16x128xf32>
      %22 = arith.select %20, %17, %21 : vector<16x128xi1>, vector<16x128xf32>
      %cst_17 = arith.constant dense<0.000000e+00> : vector<16xf32>
      %23 = vector.multi_reduction <add>, %22, %cst_17 [1] : vector<16x128xf32> to vector<16xf32>
      %24 = vector.shape_cast %23 : vector<16xf32> to vector<16x1xf32>
      %cst_18 = arith.constant 3.125000e-02 : f32
      %25 = vector.broadcast %cst_18 : f32 to vector<16x1xf32>
      %26 = arith.mulf %24, %25 : vector<16x1xf32>
      %27 = vector.broadcast %26 : vector<16x1xf32> to vector<16x128xf32>
      %28 = arith.subf %17, %27 : vector<16x128xf32>
      %cst_19 = arith.constant 0.000000e+00 : f32
      %29 = vector.broadcast %cst_19 : f32 to vector<16x128xf32>
      %30 = arith.select %20, %28, %29 : vector<16x128xi1>, vector<16x128xf32>
      %31 = arith.mulf %30, %30 : vector<16x128xf32>
      %cst_20 = arith.constant dense<0.000000e+00> : vector<16xf32>
      %32 = vector.multi_reduction <add>, %31, %cst_20 [1] : vector<16x128xf32> to vector<16xf32>
      %33 = vector.shape_cast %32 : vector<16xf32> to vector<16x1xf32>
      %cst_21 = arith.constant 0.0322580636 : f32
      %34 = vector.broadcast %cst_21 : f32 to vector<16x1xf32>
      %35 = arith.mulf %33, %34 : vector<16x1xf32>
      %36 = math.sqrt %35 : vector<16x1xf32>
      %cst_22 = arith.constant 9.99999997E-7 : f32
      %37 = vector.broadcast %cst_22 : f32 to vector<16x1xf32>
      %38 = arith.addf %36, %37 : vector<16x1xf32>
      %39 = tpu.reciprocal %38 : vector<16x1xf32> -> vector<16x1xf32>
      %c0_23 = arith.constant 0 : index
      %c0_24 = arith.constant 0 : index
      %40 = vector.load %arg6[%c0_23, %c0_24] : memref<1x128xf32, #tpu.memory_space<vmem>>, vector<1x128xf32>
      %41 = vector.broadcast %40 : vector<1x128xf32> to vector<16x128xf32>
      %42 = vector.broadcast %39 : vector<16x1xf32> to vector<16x128xf32>
      %43 = arith.mulf %41, %42 : vector<16x128xf32>
      %44 = arith.mulf %30, %43 : vector<16x128xf32>
      %c0_25 = arith.constant 0 : index
      %c0_26 = arith.constant 0 : index
      %45 = vector.load %arg7[%c0_25, %c0_26] : memref<1x128xf32, #tpu.memory_space<vmem>>, vector<1x128xf32>
      %46 = vector.broadcast %45 : vector<1x128xf32> to vector<16x128xf32>
      %47 = arith.addf %44, %46 : vector<16x128xf32>
      %c0_27 = arith.constant 0 : index
      %c0_28 = arith.constant 0 : index
      %48 = vector.load %arg8[%c0_27, %c0_28] : memref<16x128xf32, #tpu.memory_space<vmem>>, vector<16x128xf32>
      tpu.vector_store %arg8[%c0_27, %c0_28], %47 {strides = array<i32>} : memref<16x128xf32, #tpu.memory_space<vmem>>, vector<16x128xf32>,
    } else {
    }
    return
  }
  func.func @transform_0(%arg0: i32, %arg1: i32) -> (i32, i32) {
    %c0_i32 = arith.constant 0 : i32
    return %arg0, %arg1 : i32, i32
  }
  func.func @transform_1(%arg0: i32, %arg1: i32) -> (i32, i32) {
    %c0_i32 = arith.constant 0 : i32
    %c0_i32_0 = arith.constant 0 : i32
    return %arg0, %c0_i32 : i32, i32
  }
  func.func @transform_2(%arg0: i32, %arg1: i32) -> (i32, i32) {
    %c0_i32 = arith.constant 0 : i32
    %c0_i32_0 = arith.constant 0 : i32
    return %arg1, %c0_i32 : i32, i32
  }
  func.func @transform_3(%arg0: i32, %arg1: i32) -> (i32, i32) {
    %c0_i32 = arith.constant 0 : i32
    %c0_i32_0 = arith.constant 0 : i32
    %c0_i32_1 = arith.constant 0 : i32
    return %c0_i32, %c0_i32_0 : i32, i32
  }
  func.func @transform_4(%arg0: i32, %arg1: i32) -> (i32, i32) {
    %c0_i32 = arith.constant 0 : i32
    %c0_i32_0 = arith.constant 0 : i32
    %c0_i32_1 = arith.constant 0 : i32
    return %c0_i32, %c0_i32_0 : i32, i32
  }
  func.func @transform_5(%arg0: i32, %arg1: i32) -> (i32, i32) {
    %c0_i32 = arith.constant 0 : i32
    %c0_i32_0 = arith.constant 0 : i32
    %c0_i32_1 = arith.constant 0 : i32
    return %c0_i32, %c0_i32_0 : i32, i32
  }
  func.func @transform_6(%arg0: i32, %arg1: i32) -> (i32, i32) {
    %c0_i32 = arith.constant 0 : i32
    %c0_i32_0 = arith.constant 0 : i32
    return %arg0, %c0_i32 : i32, i32
  }
}

</mosaic_0001>

<llo_original>
// kernel: sublayer_forward.1
$region0: #{sublayer_forward.1}
  #allocation0 [shape = 'u32[]', space=smem, size = 0x4, offset = 0x4, fixed_abs, tag = 'smem constant byte address 0x4 - core index']
  #allocation1 [shape = 'u32[72,128]{1,0:T(1,128)}', space=vmem, size = 0x9000, scoped, tag = 'internal scratch']
  #allocation2 [shape = 'f32[16,128]{1,0:T(8,128)}', space=vmem, size = 0x2000, scoped, tag = 'scratch operand']
  %s0 = inlined_call_operand.vmem [shape: bf16[16,128], index: 0, kind: input, shape index: {}]
  %s1 = inlined_call_operand.vmem [shape: f32[16,128], index: 1, kind: input, shape index: {}]
  %s2 = inlined_call_operand.vmem [shape: bf16[128,128], index: 2, kind: input, shape index: {}]
  %s3 = inlined_call_operand.vmem [shape: f32[1,128], index: 3, kind: input, shape index: {}]
  %s4 = inlined_call_operand.vmem [shape: f32[1,128], index: 4, kind: input, shape index: {}]
  %s5 = inlined_call_operand.vmem [shape: f32[1,128], index: 5, kind: input, shape index: {}]
  %s6 = inlined_call_operand.vmem [shape: f32[16,128], index: 6, kind: output, shape index: {}]
  %s7 = sld [smem:[#allocation0]]
  $region42: #{sublayer_forward.1} parent=0
    _
  %s9 = ssub.s32 1, %s7
  %s10 = scalar_select 0, %s9, %s7
  // Predicated region
  $region2: #{sublayer_forward.1} parent=0 // pred_check
    _
  $region3: #{sublayer_forward.1} parent=0 // pred_check_branch
    %12 = sbr.rel (0) target = $region5
  $region4: #{sublayer_forward.1} parent=0 // pred_region
    _
  $region5: #{sublayer_forward.1} parent=0 // pred_fallthru
    _
  // Predicated region
  $region6: #{sublayer_forward.1} parent=0 // pred_check
    _
  $region7: #{sublayer_forward.1} parent=0 // pred_check_branch
    %14 = sbr.rel (0) target = $region9
  $region8: #{sublayer_forward.1} parent=0 // pred_region
    _
  $region9: #{sublayer_forward.1} parent=0 // pred_fallthru
    _
  // Predicated region
  $region10: #{sublayer_forward.1} parent=0 // pred_check
    _
  $region11: #{sublayer_forward.1} parent=0 // pred_check_branch
    %16 = sbr.rel (0) target = $region13
  $region12: #{sublayer_forward.1} parent=0 // pred_region
    _
  $region13: #{sublayer_forward.1} parent=0 // pred_fallthru
    _
  // Predicated region
  $region14: #{sublayer_forward.1} parent=0 // pred_check
    _
  $region15: #{sublayer_forward.1} parent=0 // pred_check_branch
    %18 = sbr.rel (0) target = $region17
  $region16: #{sublayer_forward.1} parent=0 // pred_region
    _
  $region17: #{sublayer_forward.1} parent=0 // pred_fallthru
    _
  // Predicated region
  $region18: #{sublayer_forward.1} parent=0 // pred_check
    _
  $region19: #{sublayer_forward.1} parent=0 // pred_check_branch
    %20 = sbr.rel (0) target = $region21
  $region20: #{sublayer_forward.1} parent=0 // pred_region
    _
  $region21: #{sublayer_forward.1} parent=0 // pred_fallthru
    _
  // Predicated region
  $region22: #{sublayer_forward.1} parent=0 // pred_check
    _
  $region23: #{sublayer_forward.1} parent=0 // pred_check_branch
    %22 = sbr.rel (0) target = $region25
  $region24: #{sublayer_forward.1} parent=0 // pred_region
    _
  $region25: #{sublayer_forward.1} parent=0 // pred_fallthru
    _
  %p23 = scmp.eq.s32.totalorder 0, 0
  // Predicated region
  $region26: #{sublayer_forward.1} parent=0 // pred_check
    %p24 = pneg %p23
  $region27: #{sublayer_forward.1} parent=0 // pred_check_branch
    %26 = sbr.rel (%p24) target = $region29
  $region28: #{sublayer_forward.1} parent=0 // pred_region
    %27 = vst [vmem:[#allocation2] sm:$0xff] 0.0
    %28 = vst [vmem:[#allocation2 + $0x8] sm:$0xff] 0.0
  $region29: #{sublayer_forward.1} parent=0 // pred_fallthru
    _
  %v29 = vld [vmem:[#allocation2] sm:$0xff]
  %v30 = vld [vmem:[#allocation2 + $0x8] sm:$0xff]
  %v31 = vld [vmem:[%s0] sm:$0xf]
  %v32 = vld [vmem:[%s0 + $0x4] sm:$0xf]
  %v33 = vld [vmem:[%s2] sm:$0xf]
  %v34 = vld [vmem:[%s2 + $0x4] sm:$0xf]
  %v35 = vld [vmem:[%s2 + $0x8] sm:$0xf]
  %v36 = vld [vmem:[%s2 + $0xc] sm:$0xf]
  %v37 = vld [vmem:[%s2 + $0x10] sm:$0xf]
  %v38 = vld [vmem:[%s2 + $0x14] sm:$0xf]
  %v39 = vld [vmem:[%s2 + $0x18] sm:$0xf]
  %v40 = vld [vmem:[%s2 + $0x1c] sm:$0xf]
  %v41 = vld [vmem:[%s2 + $0x20] sm:$0xf]
  %v42 = vld [vmem:[%s2 + $0x24] sm:$0xf]
  %v43 = vld [vmem:[%s2 + $0x28] sm:$0xf]
  %v44 = vld [vmem:[%s2 + $0x2c] sm:$0xf]
  %v45 = vld [vmem:[%s2 + $0x30] sm:$0xf]
  %v46 = vld [vmem:[%s2 + $0x34] sm:$0xf]
  %v47 = vld [vmem:[%s2 + $0x38] sm:$0xf]
  %v48 = vld [vmem:[%s2 + $0x3c] sm:$0xf]
  %v51 = vunpack.c.l.b16 %v31
  %v52 = vunpack.c.l.b16 %v32
  %v53 = vpack.c.b16 %v52, %v51
  %v71 = vunpack.c.l.b16 %v33
  %v72 = vunpack.c.l.b16 %v34
  %v73 = vunpack.c.l.b16 %v35
  %v74 = vunpack.c.l.b16 %v36
  %v75 = vunpack.c.l.b16 %v37
  %v76 = vunpack.c.l.b16 %v38
  %v77 = vunpack.c.l.b16 %v39
  %v78 = vunpack.c.l.b16 %v40
  %v79 = vunpack.c.l.b16 %v41
  %v80 = vunpack.c.l.b16 %v42
  %v81 = vunpack.c.l.b16 %v43
  %v82 = vunpack.c.l.b16 %v44
  %v83 = vunpack.c.l.b16 %v45
  %v84 = vunpack.c.l.b16 %v46
  %v85 = vunpack.c.l.b16 %v47
  %v86 = vunpack.c.l.b16 %v48
  %v87 = vpack.c.b16 %v72, %v71
  %v88 = vpack.c.b16 %v74, %v73
  %v89 = vpack.c.b16 %v76, %v75
  %v90 = vpack.c.b16 %v78, %v77
  %v91 = vpack.c.b16 %v80, %v79
  %v92 = vpack.c.b16 %v82, %v81
  %v93 = vpack.c.b16 %v84, %v83
  %v94 = vpack.c.b16 %v86, %v85
  %103 = vmatpush.bf16.msra.mxu0 %v94
  %104 = vmatpush.bf16.msra.mxu0 %v93
  %105 = vmatpush.bf16.msra.mxu0 %v92
  %106 = vmatpush.bf16.msra.mxu0 %v91
  %107 = vmatpush.bf16.msra.mxu0 %v90
  %108 = vmatpush.bf16.msra.mxu0 %v89
  %109 = vmatpush.bf16.msra.mxu0 %v88
  %110 = vmatpush.bf16.msra.mxu0 %v87
  %111 = vmatmul.bf16.gmra.mxu0 %v53
  %v112 = vpop.f32.mrf.mxu0
  %v113 = vadd.f32 0.0, %v112
  %v114 = vpop.f32.mrf.mxu0
  %v115 = vadd.f32 0.0, %v114
  %116 = vdwg.mxu0
  %v117 = vadd.f32 %v29, %v113
  %v118 = vadd.f32 %v30, %v115
  %119 = vst [vmem:[#allocation2] sm:$0xff] %v117
  %120 = vst [vmem:[#allocation2 + $0x8] sm:$0xff] %v118
  // Predicated region
  $region30: #{sublayer_forward.1} parent=0 // pred_check
    %p121 = pneg %p23
  $region31: #{sublayer_forward.1} parent=0 // pred_check_branch
    %123 = sbr.rel (%p121) target = $region33
  $region32: #{sublayer_forward.1} parent=0 // pred_region
    %v124 = vld [vmem:[#allocation2] sm:$0xff]
    %v125 = vld [vmem:[#allocation2 + $0x8] sm:$0xff]
    %v126 = vld [vmem:[%s3] sm:$0x1]
    %v128 = vperm.slane %v126, 0
    %v130 = vadd.f32 %v124, %v128
    %v131 = vadd.f32 %v125, %v128
    %v132 = vld [vmem:[%s1] sm:$0xff]
    %v133 = vld [vmem:[%s1 + $0x8] sm:$0xff]
    %v134 = vadd.f32 %v130, %v132
    %v135 = vadd.f32 %v131, %v133
    %v136 = vlaneseq
    %v137 = vand.u32 %v136, 127
    %vm138 = vcmp.lt.s32.totalorder %v137, 32
    %v139 = vsel %vm138, %v134, 0.0
    %v140 = vsel %vm138, %v135, 0.0
    %141 = vadd.xlane.f32.xlu0 %v139
    %v142 = vpop.xlane.xlu0 %141
    %143 = vadd.xlane.f32.xlu0 %v140
    %v144 = vpop.xlane.xlu0 %143
    %v145 = vmul.f32 %v142, 0.03125
    %v146 = vmul.f32 %v144, 0.03125
    %v147 = vsub.f32 %v134, %v145
    %v148 = vsub.f32 %v135, %v146
    %v149 = vsel %vm138, %v147, 0.0
    %v150 = vsel %vm138, %v148, 0.0
    %v151 = vmul.f32 %v149, %v149
    %v152 = vmul.f32 %v150, %v150
    %153 = vadd.xlane.f32.xlu0 %v151
    %v154 = vpop.xlane.xlu0 %153
    %155 = vadd.xlane.f32.xlu0 %v152
    %v156 = vpop.xlane.xlu0 %155
    %v157 = vmul.f32 %v154, 0.032258064
    %v158 = vmul.f32 %v156, 0.032258064
    %v159 = vrsqrt.pop %v157
    %v160 = vmul.f32 %v159, %v157
    %v161 = vmul.f32 %v160, %v159
    %v162 = vmul.f32 0.5, %v161
    %v163 = vsub.f32 1.5, %v162
    %v164 = vmul.f32 %v159, %v163
    %v165 = vmul.f32 %v157, %v164
    %vm166 = vcmp.eq.f32.partialorder %v157, inf
    %v167 = vsel %vm166, %v157, %v165
    %vm168 = vcmp.eq.f32.partialorder %v157, 0.0
    %v169 = vand.u32 %v157, 2147483648
    %v170 = vsel %vm168, %v169, %v167
    %v171 = vrsqrt.pop %v158
    %v172 = vmul.f32 %v171, %v158
    %v173 = vmul.f32 %v172, %v171
    %v174 = vmul.f32 0.5, %v173
    %v175 = vsub.f32 1.5, %v174
    %v176 = vmul.f32 %v171, %v175
    %v177 = vmul.f32 %v158, %v176
    %vm178 = vcmp.eq.f32.partialorder %v158, inf
    %v179 = vsel %vm178, %v158, %v177
    %vm180 = vcmp.eq.f32.partialorder %v158, 0.0
    %v181 = vand.u32 %v158, 2147483648
    %v182 = vsel %vm180, %v181, %v179
    %v183 = vadd.f32 %v170, 1e-06
    %v184 = vadd.f32 %v182, 1e-06
    %v185 = vrcp.pop %v183
    %v186 = vmul.f32 %v183, %v185
    %v187 = vsub.f32 1.0, %v186
    %v188 = vmul.f32 %v185, %v187
    %v189 = vadd.f32 %v185, %v188
    %vm190 = vweird.f32 %v183
    %vm191 = vweird.f32 %v185
    %vm192 = vmor %vm190, %vm191
    %v193 = vsel %vm192, %v185, %v189
    %v194 = vand.u32 2147483647, %v183
    %vm195 = vcmp.eq.f32.partialorder %v194, 8.507059e+37
    %v196 = vand.u32 %v183, 2147483648
    %v197 = vor.u32 1.1754944e-38, %v196
    %v198 = vsel %vm195, %v197, %v193
    %v199 = vrcp.pop %v184
    %v200 = vmul.f32 %v184, %v199
    %v201 = vsub.f32 1.0, %v200
    %v202 = vmul.f32 %v199, %v201
    %v203 = vadd.f32 %v199, %v202
    %vm204 = vweird.f32 %v184
    %vm205 = vweird.f32 %v199
    %vm206 = vmor %vm204, %vm205
    %v207 = vsel %vm206, %v199, %v203
    %v208 = vand.u32 2147483647, %v184
    %vm209 = vcmp.eq.f32.partialorder %v208, 8.507059e+37
    %v210 = vand.u32 %v184, 2147483648
    %v211 = vor.u32 1.1754944e-38, %v210
    %v212 = vsel %vm209, %v211, %v207
    %v213 = vld [vmem:[%s4] sm:$0x1]
    %v215 = vperm.slane %v213, 0
    %v217 = vmul.f32 %v215, %v198
    %v218 = vmul.f32 %v215, %v212
    %v219 = vmul.f32 %v149, %v217
    %v220 = vmul.f32 %v150, %v218
    %v221 = vld [vmem:[%s5] sm:$0x1]
    %v223 = vperm.slane %v221, 0
    %v225 = vadd.f32 %v219, %v223
    %v226 = vadd.f32 %v220, %v223
    %227 = vst [vmem:[%s6] sm:$0xff] %v225
    %228 = vst [vmem:[%s6 + $0x8] sm:$0xff] %v226
  $region33: #{sublayer_forward.1} parent=0 // pred_fallthru
    _
  // Predicated region
  $region34: #{sublayer_forward.1} parent=0 // pred_check
    _
  $region35: #{sublayer_forward.1} parent=0 // pred_check_branch
    %230 = sbr.rel (0) target = $region37
  $region36: #{sublayer_forward.1} parent=0 // pred_region
    _
  $region37: #{sublayer_forward.1} parent=0 // pred_fallthru
    _
  // Predicated region
  $region38: #{sublayer_forward.1} parent=0 // pred_check
    _
  $region39: #{sublayer_forward.1} parent=0 // pred_check_branch
    %232 = sbr.rel (0) target = $region41
  $region40: #{sublayer_forward.1} parent=0 // pred_region
    _
  $region41: #{sublayer_forward.1} parent=0 // pred_fallthru
    _

</llo_original>
